<compile_context>
chip_gen: v7x
topology: tpu7x:2x2x1
jax: 0.10.0
libtpu: 0.0.40
codegen_flags: <defaults>
</compile_context>

<pallas_src>
import jax
import jax.numpy as jnp
from jax.experimental import pallas as pl
from jax.experimental.pallas import tpu as pltpu

PATCH = 4                # patch size of the stand-in ViT patch embedding
EMBED = 128              # backbone output feature dim (fc1 expects 128)
HID = 512                # fc1 output dim
NUM_CLASSES = 200        # fc2 output dim (PyTorch head)
NUM_CLASSES_PAD = 256    # lane-dense padded class dim (zero-padded columns)
PACK = 2                 # patches packed per 128-lane row (64-d feats x 2)


def _round_up(x, m):
    return ((x + m - 1) // m) * m


# ----------------------------- Pallas kernel -------------------------------

def fused_classifier_kernel(p_ref, wp_ref, bp_ref, w1_ref, b1_ref,
                            w2_ref, b2_ref, o_ref):
    # p_ref : (Bt, N/2, 128) bf16  patch pairs packed along the lane axis
    # wp_ref: (128, EMBED)   bf16  [Wp; Wp] / n_patches   (stand-in backbone)
    # bp_ref: (1, EMBED)     f32
    # w1_ref: (EMBED, HID)   bf16, b1_ref: (1, HID)   f32   (fc1)
    # w2_ref: (HID, 256)     bf16, b2_ref: (1, 256)   f32   (fc2, zero-padded)
    # o_ref : (Bt, 256)      f32
    #
    # Sum-pool with f32 accumulation (mean scale + pair-packing duplication of
    # Wp are folded into wp_ref at init), then backbone / fc1 / fc2 matmuls on
    # the MXU with bf16 operands and f32 accumulation.
    pooled = jnp.sum(p_ref[...], axis=1, dtype=jnp.float32)             # (Bt, 128)
    feat = jnp.dot(pooled.astype(jnp.bfloat16), wp_ref[...],
                   preferred_element_type=jnp.float32) + bp_ref[...]    # (Bt, EMBED)
    # Head exactly as in the PyTorch forward: fc2(fc1(feat)), no activation.
    h = jnp.dot(feat.astype(jnp.bfloat16), w1_ref[...],
                preferred_element_type=jnp.float32) + b1_ref[...]       # (Bt, HID)
    o = jnp.dot(h.astype(jnp.bfloat16), w2_ref[...],
                preferred_element_type=jnp.float32) + b2_ref[...]       # (Bt, OUT_PAD)
    o_ref[...] = o.astype(o_ref.dtype)


# ------------------------------- wrapper ------------------------------------

def run_classifier(patches, wp, bp, w1, b1, w2, b2, *, b_tile=512):
    B, NP, PF = patches.shape
    assert wp.shape == (PF, EMBED)

    # Batch tile sizing:
    #  * Large B: keep the requested large tile (default 512, multiple of 256)
    #    and guarantee >= 2 grid steps so the "parallel" axis shards across
    #    v7x's two TensorCores.
    #  * Small B: shrink to a sublane-packed tile (~half the batch, >= 16 rows)
    #    so we don't DMA mostly-padding tiles.
    if B < 2 * b_tile:
        b_tile = max(16, _round_up(-(-B // 2), 16))
    Bp = _round_up(B, b_tile)
    if Bp != B:
        patches = jnp.pad(patches, ((0, Bp - B), (0, 0), (0, 0)))

    grid = (Bp // b_tile,)
    resident = lambda i: (0, 0)   # weights/biases stay in VMEM across grid steps

    out = pl.pallas_call(
        fused_classifier_kernel,
        out_shape=jax.ShapeDtypeStruct((Bp, NUM_CLASSES_PAD), jnp.float32),
        grid=grid,
        in_specs=[
            pl.BlockSpec((b_tile, NP, PF), lambda i: (i, 0, 0)),
            pl.BlockSpec((PF, EMBED), resident),
            pl.BlockSpec((1, EMBED), resident),
            pl.BlockSpec((EMBED, HID), resident),
            pl.BlockSpec((1, HID), resident),
            pl.BlockSpec((HID, NUM_CLASSES_PAD), resident),
            pl.BlockSpec((1, NUM_CLASSES_PAD), resident),
        ],
        out_specs=pl.BlockSpec((b_tile, NUM_CLASSES_PAD), lambda i: (i, 0)),
        compiler_params=pltpu.CompilerParams(
            dimension_semantics=("parallel",),
            vmem_limit_bytes=32 * 1024 * 1024),
    )(patches, wp, bp, w1, b1, w2, b2)

    # Strip batch padding and the zero-padded class columns.
    return out[:B, :NUM_CLASSES]


# --------------------------------- glue -------------------------------------

def extract_patches(x):
    # x: (B, C, H, W) NCHW -> (B, n_patches/PACK, PACK*C*PATCH*PATCH) bf16.
    # Patch features (C*4*4 = 64 here) are packed PACK=2 patches per row so the
    # lane (last) dim is 128 with ZERO padding bytes: the dominant HBM read in
    # this memory-bound kernel carries only real data.
    B, C, H, W = x.shape
    ph, pw = H // PATCH, W // PATCH
    n = ph * pw
    pdim = C * PATCH * PATCH
    assert n % PACK == 0, "patch count must be even for lane packing"
    assert PACK * pdim == 128, "packed patch feature dim must be 128"
    p = x.reshape(B, C, ph, PATCH, pw, PATCH)
    p = p.transpose(0, 2, 4, 1, 3, 5)            # B, ph, pw, C, PATCH, PATCH
    p = p.reshape(B, n // PACK, PACK * pdim)     # contiguous pair-packing reshape
    return p.astype(jnp.bfloat16)


def init_params(key, in_channels, n_patches):
    # Deterministic, PyTorch-Linear-style uniform(+-1/sqrt(fan_in)) init.
    # Weights stored bf16 (full-rate MXU), biases f32 (added to f32 accum).
    pdim = in_channels * PATCH * PATCH
    ks = jax.random.split(key, 6)

    def linear(kw, kb, fan_in, fan_out, n_pad):
        lim = float(fan_in) ** -0.5
        w = jax.random.uniform(kw, (fan_in, fan_out), jnp.float32, -lim, lim)
        b = jax.random.uniform(kb, (1, fan_out), jnp.float32, -lim, lim)
        w = jnp.pad(w, ((0, 0), (0, n_pad - fan_out)))
        b = jnp.pad(b, ((0, 0), (0, n_pad - fan_out)))
        return w, b

    # Stand-in backbone patch embedding.  Fold (a) the 1/n_patches mean-pool
    # scale and (b) the PACK-fold row duplication required by the lane-packed
    # patch layout directly into the weight, so the in-kernel sum-pool is exact.
    wp, bp = linear(ks[0], ks[1], pdim, EMBED, EMBED)
    wp = jnp.concatenate([wp] * PACK, axis=0) / float(n_patches)   # (PACK*pdim, EMBED)

    w1, b1 = linear(ks[2], ks[3], EMBED, HID, HID)                       # fc1: Linear(128, 512)
    w2, b2 = linear(ks[4], ks[5], HID, NUM_CLASSES, NUM_CLASSES_PAD)     # fc2: Linear(512, 200)
    return (wp.astype(jnp.bfloat16), bp, w1.astype(jnp.bfloat16), b1,
            w2.astype(jnp.bfloat16), b2)


def classifier_forward(x, params):
    patches = extract_patches(x)                 # plain-JAX layout glue
    return run_classifier(patches, *params)      # single fused Pallas call


def _reference_forward(x, params):
    # Pure-JAX f32 reference using the exact same folded parameters.
    wp, bp, w1, b1, w2, b2 = [p.astype(jnp.float32) for p in params]
    p = extract_patches(x).astype(jnp.float32)
    feat = jnp.sum(p, axis=1) @ wp + bp
    h = feat @ w1 + b1
    o = h @ w2 + b2
    return o[:, :NUM_CLASSES]


# --------------------------------- main --------------------------------------

if __name__ == "__main__":
    key = jax.random.PRNGKey(0)
    kx, kp = jax.random.split(key)

    # Small NCHW input consistent with an image backbone: B=2, C=4, H=W=16.
    x = jax.random.normal(kx, (2, 4, 16, 16), jnp.float32)
    n_patches = (16 // PATCH) * (16 // PATCH)
    params = init_params(kp, in_channels=4, n_patches=n_patches)

    out = jax.block_until_ready(classifier_forward(x, params))
    assert out.shape == (2, NUM_CLASSES) and out.dtype == jnp.float32

    ref = jax.block_until_ready(_reference_forward(x, params))
    max_err = float(jnp.max(jnp.abs(out - ref)))
    assert max_err < 5e-2, f"kernel/reference mismatch: {max_err}"
    print("KERNEL_OK")
</pallas_src>

<mosaic_0001>
module attributes {stable_mosaic.version = 11 : i64} {
  func.func @fused_classifier_kernel(%arg0: i32, %arg1: memref<16x8x128xbf16, #tpu.memory_space<vmem>>, %arg2: memref<128x128xbf16, #tpu.memory_space<vmem>>, %arg3: memref<1x128xf32, #tpu.memory_space<vmem>>, %arg4: memref<128x512xbf16, #tpu.memory_space<vmem>>, %arg5: memref<1x512xf32, #tpu.memory_space<vmem>>, %arg6: memref<512x256xbf16, #tpu.memory_space<vmem>>, %arg7: memref<1x256xf32, #tpu.memory_space<vmem>>, %arg8: memref<16x256xf32, #tpu.memory_space<vmem>>) attributes {dimension_semantics = [#tpu.dimension_semantics<parallel>], iteration_bounds = array<i64: 1>, scalar_prefetch = 0 : i64, scratch_operands = 0 : i64, tpu.core_type = #tpu.core_type<tc>, window_params = [{transform_indices = @transform_0, window_bounds = array<i64: 16, 8, 128>}, {pipeline_mode = #tpu.pipeline_mode<synchronous>, transform_indices = @transform_1, window_bounds = array<i64: 128, 128>}, {pipeline_mode = #tpu.pipeline_mode<synchronous>, transform_indices = @transform_2, window_bounds = array<i64: 1, 128>}, {pipeline_mode = #tpu.pipeline_mode<synchronous>, transform_indices = @transform_3, window_bounds = array<i64: 128, 512>}, {pipeline_mode = #tpu.pipeline_mode<synchronous>, transform_indices = @transform_4, window_bounds = array<i64: 1, 512>}, {pipeline_mode = #tpu.pipeline_mode<synchronous>, transform_indices = @transform_5, window_bounds = array<i64: 512, 256>}, {pipeline_mode = #tpu.pipeline_mode<synchronous>, transform_indices = @transform_6, window_bounds = array<i64: 1, 256>}, {transform_indices = @transform_7, window_bounds = array<i64: 16, 256>}]} {
    %c0 = arith.constant 0 : index
    %c0_0 = arith.constant 0 : index
    %c0_1 = arith.constant 0 : index
    %0 = vector.load %arg1[%c0, %c0_0, %c0_1] : memref<16x8x128xbf16, #tpu.memory_space<vmem>>, vector<16x8x128xbf16>
    %1 = arith.extf %0 : vector<16x8x128xbf16> to vector<16x8x128xf32>
    %cst = arith.constant dense<0.000000e+00> : vector<16x128xf32>
    %2 = vector.multi_reduction <add>, %1, %cst [1] : vector<16x8x128xf32> to vector<16x128xf32>
    %3 = arith.truncf %2 : vector<16x128xf32> to vector<16x128xbf16>
    %c0_2 = arith.constant 0 : index
    %c0_3 = arith.constant 0 : index
    %4 = vector.load %arg2[%c0_2, %c0_3] : memref<128x128xbf16, #tpu.memory_space<vmem>>, vector<128x128xbf16>
    %cst_4 = arith.constant dense<0.000000e+00> : vector<16x128xf32>
    %5 = tpu.matmul %3, %4, %cst_4 {dimension_numbers = #tpu.dot_dimension_numbers<[1], [0], [0], [1], [0, 0, 1, 1], [], []>} : vector<16x128xbf16>, vector<128x128xbf16>, vector<16x128xf32> -> vector<16x128xf32>
    %c0_5 = arith.constant 0 : index
    %c0_6 = arith.constant 0 : index
    %6 = vector.load %arg3[%c0_5, %c0_6] : memref<1x128xf32, #tpu.memory_space<vmem>>, vector<1x128xf32>
    %7 = vector.broadcast %6 : vector<1x128xf32> to vector<16x128xf32>
    %8 = arith.addf %5, %7 : vector<16x128xf32>
    %9 = arith.truncf %8 : vector<16x128xf32> to vector<16x128xbf16>
    %c0_7 = arith.constant 0 : index
    %c0_8 = arith.constant 0 : index
    %10 = vector.load %arg4[%c0_7, %c0_8] : memref<128x512xbf16, #tpu.memory_space<vmem>>, vector<128x512xbf16>
    %cst_9 = arith.constant dense<0.000000e+00> : vector<16x512xf32>
    %11 = tpu.matmul %9, %10, %cst_9 {dimension_numbers = #tpu.dot_dimension_numbers<[1], [0], [0], [1], [0, 0, 1, 1], [], []>} : vector<16x128xbf16>, vector<128x512xbf16>, vector<16x512xf32> -> vector<16x512xf32>
    %c0_10 = arith.constant 0 : index
    %c0_11 = arith.constant 0 : index
    %12 = vector.load %arg5[%c0_10, %c0_11] : memref<1x512xf32, #tpu.memory_space<vmem>>, vector<1x512xf32>
    %13 = vector.broadcast %12 : vector<1x512xf32> to vector<16x512xf32>
    %14 = arith.addf %11, %13 : vector<16x512xf32>
    %15 = arith.truncf %14 : vector<16x512xf32> to vector<16x512xbf16>
    %c0_12 = arith.constant 0 : index
    %c0_13 = arith.constant 0 : index
    %16 = vector.load %arg6[%c0_12, %c0_13] : memref<512x256xbf16, #tpu.memory_space<vmem>>, vector<512x256xbf16>
    %cst_14 = arith.constant dense<0.000000e+00> : vector<16x256xf32>
    %17 = tpu.matmul %15, %16, %cst_14 {dimension_numbers = #tpu.dot_dimension_numbers<[1], [0], [0], [1], [0, 0, 1, 1], [], []>} : vector<16x512xbf16>, vector<512x256xbf16>, vector<16x256xf32> -> vector<16x256xf32>
    %c0_15 = arith.constant 0 : index
    %c0_16 = arith.constant 0 : index
    %18 = vector.load %arg7[%c0_15, %c0_16] : memref<1x256xf32, #tpu.memory_space<vmem>>, vector<1x256xf32>
    %19 = vector.broadcast %18 : vector<1x256xf32> to vector<16x256xf32>
    %20 = arith.addf %17, %19 : vector<16x256xf32>
    %c0_17 = arith.constant 0 : index
    %c0_18 = arith.constant 0 : index
    %21 = vector.load %arg8[%c0_17, %c0_18] : memref<16x256xf32, #tpu.memory_space<vmem>>, vector<16x256xf32>
    tpu.vector_store %arg8[%c0_17, %c0_18], %20 {strides = array<i32>} : memref<16x256xf32, #tpu.memory_space<vmem>>, vector<16x256xf32>,
    return
  }
  func.func @transform_0(%arg0: i32) -> (i32, i32, i32) {
    %c0_i32 = arith.constant 0 : i32
    %c0_i32_0 = arith.constant 0 : i32
    %c0_i32_1 = arith.constant 0 : i32
    return %arg0, %c0_i32, %c0_i32_0 : i32, i32, i32
  }
  func.func @transform_1(%arg0: i32) -> (i32, i32) {
    %c0_i32 = arith.constant 0 : i32
    %c0_i32_0 = arith.constant 0 : i32
    %c0_i32_1 = arith.constant 0 : i32
    return %c0_i32, %c0_i32_0 : i32, i32
  }
  func.func @transform_2(%arg0: i32) -> (i32, i32) {
    %c0_i32 = arith.constant 0 : i32
    %c0_i32_0 = arith.constant 0 : i32
    %c0_i32_1 = arith.constant 0 : i32
    return %c0_i32, %c0_i32_0 : i32, i32
  }
  func.func @transform_3(%arg0: i32) -> (i32, i32) {
    %c0_i32 = arith.constant 0 : i32
    %c0_i32_0 = arith.constant 0 : i32
    %c0_i32_1 = arith.constant 0 : i32
    return %c0_i32, %c0_i32_0 : i32, i32
  }
  func.func @transform_4(%arg0: i32) -> (i32, i32) {
    %c0_i32 = arith.constant 0 : i32
    %c0_i32_0 = arith.constant 0 : i32
    %c0_i32_1 = arith.constant 0 : i32
    return %c0_i32, %c0_i32_0 : i32, i32
  }
  func.func @transform_5(%arg0: i32) -> (i32, i32) {
    %c0_i32 = arith.constant 0 : i32
    %c0_i32_0 = arith.constant 0 : i32
    %c0_i32_1 = arith.constant 0 : i32
    return %c0_i32, %c0_i32_0 : i32, i32
  }
  func.func @transform_6(%arg0: i32) -> (i32, i32) {
    %c0_i32 = arith.constant 0 : i32
    %c0_i32_0 = arith.constant 0 : i32
    %c0_i32_1 = arith.constant 0 : i32
    return %c0_i32, %c0_i32_0 : i32, i32
  }
  func.func @transform_7(%arg0: i32) -> (i32, i32) {
    %c0_i32 = arith.constant 0 : i32
    %c0_i32_0 = arith.constant 0 : i32
    return %arg0, %c0_i32 : i32, i32
  }
}

</mosaic_0001>

<llo_original>
// kernel: tpu_custom_call.1
$region0: #{tpu_custom_call.1}
  #allocation0 [shape = 'u32[]', space=smem, size = 0x4, offset = 0x4, fixed_abs, tag = 'smem constant byte address 0x4 - core index']
  #allocation1 [shape = 'u32[144,128]{1,0:T(1,128)}', space=vmem, size = 0x12000, scoped, tag = 'internal scratch']
  %s0 = inlined_call_operand.hbm [shape: bf16[16,8,128], index: 0, kind: input, shape index: {}]
  %s1 = inlined_call_operand.hbm [shape: bf16[128,128], index: 1, kind: input, shape index: {}]
  %s2 = inlined_call_operand.vmem [shape: f32[1,128], index: 2, kind: input, shape index: {}]
  %s3 = inlined_call_operand.hbm [shape: bf16[128,512], index: 3, kind: input, shape index: {}]
  %s4 = inlined_call_operand.vmem [shape: f32[1,512], index: 4, kind: input, shape index: {}]
  %s5 = inlined_call_operand.hbm [shape: bf16[512,256], index: 5, kind: input, shape index: {}]
  %s6 = inlined_call_operand.vmem [shape: f32[1,256], index: 6, kind: input, shape index: {}]
  %s7 = inlined_call_operand.hbm [shape: f32[16,256], index: 7, kind: output, shape index: {}]
  %s8 = sld [smem:[#allocation0]]
  $region54: #{tpu_custom_call.1} parent=0
    _
  %s10 = ssub.s32 1, %s8
  %s11 = scalar_select 0, %s10, %s8
  $region1: #{tpu_custom_call.1} parent=0
    #allocation2 [shape = 'u8[32768]{0}', space=vmem, size = 0x8000, scoped, tag = 'input window, operand 0, single buffered']
    #allocation3 [shape = 's32[1]{0}', space=sflag, size = 0x4, scoped, tag = 'scoped memory for tpu_custom_call.1']
    #allocation4 [shape = 's32[1]{0}', space=sflag, size = 0x4, scoped, tag = 'scoped memory for tpu_custom_call.1']
    #allocation5 [shape = 'u8[32768]{0}', space=vmem, size = 0x8000, scoped, tag = 'input window, operand 1, single buffered']
    #allocation6 [shape = 's32[1]{0}', space=sflag, size = 0x4, scoped, tag = 'scoped memory for tpu_custom_call.1']
    #allocation7 [shape = 'u8[131072]{0}', space=vmem, size = 0x20000, scoped, tag = 'input window, operand 3, single buffered']
    #allocation8 [shape = 'u8[262144]{0}', space=vmem, size = 0x40000, scoped, tag = 'input window, operand 5, single buffered']
    #allocation9 [shape = 's32[1]{0}', space=sflag, size = 0x4, scoped, tag = 'scoped memory for tpu_custom_call.1']
    #allocation10 [shape = 'u8[16384]{0}', space=vmem, size = 0x4000, scoped, tag = 'output window, operand 0, single buffered']
    %12 = vsyncpa [#allocation3], 0
    %13 = vsyncpa [#allocation6], 0
    %14 = vsyncpa [#allocation9], 0
    %15 = vsyncpa [#allocation4], 0
    // Predicated region
    $region2: #{tpu_custom_call.1} parent=1 // pred_check
      _
    $region3: #{tpu_custom_call.1} parent=1 // pred_check_branch
      %17 = sbr.rel (0) target = $region5
    $region4: #{tpu_custom_call.1} parent=1 // pred_region
      %s19 = ssub.s32 1024, 1024
      %20 = vsyncadd [#allocation3], %s19
      %s21 = sshll.u32 [#allocation2], 4
      %s22 = int_to_ptr.vmem [resolvable:$true] %s21
      %27 = dma.hbm_to_vmem [thread:$0]  %s0, 1024, %s22, [#allocation3], 64, 64, 4
    $region5: #{tpu_custom_call.1} parent=1 // pred_fallthru
      _
    // Predicated region
    $region6: #{tpu_custom_call.1} parent=1 // pred_check
      _
    $region7: #{tpu_custom_call.1} parent=1 // pred_check_branch
      %29 = sbr.rel (0) target = $region9
    $region8: #{tpu_custom_call.1} parent=1 // pred_region
      %s31 = ssub.s32 1024, 1024
      %32 = vsyncadd [#allocation6], %s31
      %s33 = sshll.u32 [#allocation5], 4
      %s34 = int_to_ptr.vmem [resolvable:$true] %s33
      %39 = dma.hbm_to_vmem [thread:$0]  %s1, 1024, %s34, [#allocation6], 64, 64, 4
    $region9: #{tpu_custom_call.1} parent=1 // pred_fallthru
      _
    // Predicated region
    $region10: #{tpu_custom_call.1} parent=1 // pred_check
      _
    $region11: #{tpu_custom_call.1} parent=1 // pred_check_branch
      %41 = sbr.rel (0) target = $region13
    $region12: #{tpu_custom_call.1} parent=1 // pred_region
      _
    $region13: #{tpu_custom_call.1} parent=1 // pred_fallthru
      _
    // Predicated region
    $region14: #{tpu_custom_call.1} parent=1 // pred_check
      _
    $region15: #{tpu_custom_call.1} parent=1 // pred_check_branch
      %43 = sbr.rel (0) target = $region17
    $region16: #{tpu_custom_call.1} parent=1 // pred_region
      %s45 = ssub.s32 4096, 4096
      %46 = vsyncadd [#allocation6], %s45
      %s47 = sshll.u32 [#allocation7], 4
      %s48 = int_to_ptr.vmem [resolvable:$true] %s47
      %53 = dma.hbm_to_vmem [thread:$0]  %s3, 4096, %s48, [#allocation6], 256, 256, 16
    $region17: #{tpu_custom_call.1} parent=1 // pred_fallthru
      _
    // Predicated region
    $region18: #{tpu_custom_call.1} parent=1 // pred_check
      _
    $region19: #{tpu_custom_call.1} parent=1 // pred_check_branch
      %55 = sbr.rel (0) target = $region21
    $region20: #{tpu_custom_call.1} parent=1 // pred_region
      _
    $region21: #{tpu_custom_call.1} parent=1 // pred_fallthru
      _
    // Predicated region
    $region22: #{tpu_custom_call.1} parent=1 // pred_check
      _
    $region23: #{tpu_custom_call.1} parent=1 // pred_check_branch
      %57 = sbr.rel (0) target = $region25
    $region24: #{tpu_custom_call.1} parent=1 // pred_region
      %s59 = ssub.s32 8192, 8192
      %60 = vsyncadd [#allocation9], %s59
      %s61 = sshll.u32 [#allocation8], 4
      %s62 = int_to_ptr.vmem [resolvable:$true] %s61
      %67 = dma.hbm_to_vmem [thread:$0]  %s5, 8192, %s62, [#allocation9], 128, 128, 8
    $region25: #{tpu_custom_call.1} parent=1 // pred_fallthru
      _
    // Predicated region
    $region26: #{tpu_custom_call.1} parent=1 // pred_check
      _
    $region27: #{tpu_custom_call.1} parent=1 // pred_check_branch
      %69 = sbr.rel (0) target = $region29
    $region28: #{tpu_custom_call.1} parent=1 // pred_region
      _
    $region29: #{tpu_custom_call.1} parent=1 // pred_fallthru
      _
    // Predicated region
    $region30: #{tpu_custom_call.1} parent=1 // pred_check
      _
    $region31: #{tpu_custom_call.1} parent=1 // pred_check_branch
      %71 = sbr.rel (0) target = $region33
    $region32: #{tpu_custom_call.1} parent=1 // pred_region
      %72 = dma.done [#allocation3], 1024
    $region33: #{tpu_custom_call.1} parent=1 // pred_fallthru
      _
    // Predicated region
    $region34: #{tpu_custom_call.1} parent=1 // pred_check
      _
    $region35: #{tpu_custom_call.1} parent=1 // pred_check_branch
      %74 = sbr.rel (0) target = $region37
    $region36: #{tpu_custom_call.1} parent=1 // pred_region
      %75 = dma.done [#allocation6], 1024
    $region37: #{tpu_custom_call.1} parent=1 // pred_fallthru
      _
    // Predicated region
    $region38: #{tpu_custom_call.1} parent=1 // pred_check
      _
    $region39: #{tpu_custom_call.1} parent=1 // pred_check_branch
      %77 = sbr.rel (0) target = $region41
    $region40: #{tpu_custom_call.1} parent=1 // pred_region
      %78 = dma.done [#allocation6], 4096
    $region41: #{tpu_custom_call.1} parent=1 // pred_fallthru
      _
    // Predicated region
    $region42: #{tpu_custom_call.1} parent=1 // pred_check
      _
    $region43: #{tpu_custom_call.1} parent=1 // pred_check_branch
      %80 = sbr.rel (0) target = $region45
    $region44: #{tpu_custom_call.1} parent=1 // pred_region
      %81 = dma.done [#allocation9], 8192
    $region45: #{tpu_custom_call.1} parent=1 // pred_fallthru
      _
    %v83 = vld [vmem:[#allocation2] sm:$0xf]
    %v84 = vld [vmem:[#allocation2 + $0x4] sm:$0xf]
    %v85 = vld [vmem:[#allocation2 + $0x8] sm:$0xf]
    %v86 = vld [vmem:[#allocation2 + $0xc] sm:$0xf]
    %v87 = vld [vmem:[#allocation2 + $0x10] sm:$0xf]
    %v88 = vld [vmem:[#allocation2 + $0x14] sm:$0xf]
    %v89 = vld [vmem:[#allocation2 + $0x18] sm:$0xf]
    %v90 = vld [vmem:[#allocation2 + $0x1c] sm:$0xf]
    %v91 = vld [vmem:[#allocation2 + $0x20] sm:$0xf]
    %v92 = vld [vmem:[#allocation2 + $0x24] sm:$0xf]
    %v93 = vld [vmem:[#allocation2 + $0x28] sm:$0xf]
    %v94 = vld [vmem:[#allocation2 + $0x2c] sm:$0xf]
    %v95 = vld [vmem:[#allocation2 + $0x30] sm:$0xf]
    %v96 = vld [vmem:[#allocation2 + $0x34] sm:$0xf]
    %v97 = vld [vmem:[#allocation2 + $0x38] sm:$0xf]
    %v98 = vld [vmem:[#allocation2 + $0x3c] sm:$0xf]
    %v99 = vunpack.c.l.bf16 %v83
    %v100 = vunpack.c.l.bf16 %v84
    %v101 = vunpack.c.l.bf16 %v85
    %v102 = vunpack.c.l.bf16 %v86
    %v103 = vunpack.c.l.bf16 %v87
    %v104 = vunpack.c.l.bf16 %v88
    %v105 = vunpack.c.l.bf16 %v89
    %v106 = vunpack.c.l.bf16 %v90
    %v107 = vunpack.c.l.bf16 %v91
    %v108 = vunpack.c.l.bf16 %v92
    %v109 = vunpack.c.l.bf16 %v93
    %v110 = vunpack.c.l.bf16 %v94
    %v111 = vunpack.c.l.bf16 %v95
    %v112 = vunpack.c.l.bf16 %v96
    %v113 = vunpack.c.l.bf16 %v97
    %v114 = vunpack.c.l.bf16 %v98
    %v115 = vrot.slane %v99, 4
    %v116 = vadd.f32 %v99, %v115
    %v117 = vrot.slane %v116, 2
    %v118 = vadd.f32 %v116, %v117
    %v119 = vrot.slane %v118, 1
    %v120 = vadd.f32 %v118, %v119
    %v121 = vrot.slane %v100, 4
    %v122 = vadd.f32 %v100, %v121
    %v123 = vrot.slane %v122, 2
    %v124 = vadd.f32 %v122, %v123
    %v125 = vrot.slane %v124, 1
    %v126 = vadd.f32 %v124, %v125
    %v127 = vrot.slane %v101, 4
    %v128 = vadd.f32 %v101, %v127
    %v129 = vrot.slane %v128, 2
    %v130 = vadd.f32 %v128, %v129
    %v131 = vrot.slane %v130, 1
    %v132 = vadd.f32 %v130, %v131
    %v133 = vrot.slane %v102, 4
    %v134 = vadd.f32 %v102, %v133
    %v135 = vrot.slane %v134, 2
    %v136 = vadd.f32 %v134, %v135
    %v137 = vrot.slane %v136, 1
    %v138 = vadd.f32 %v136, %v137
    %v139 = vrot.slane %v103, 4
    %v140 = vadd.f32 %v103, %v139
    %v141 = vrot.slane %v140, 2
    %v142 = vadd.f32 %v140, %v141
    %v143 = vrot.slane %v142, 1
    %v144 = vadd.f32 %v142, %v143
    %v145 = vrot.slane %v104, 4
    %v146 = vadd.f32 %v104, %v145
    %v147 = vrot.slane %v146, 2
    %v148 = vadd.f32 %v146, %v147
    %v149 = vrot.slane %v148, 1
    %v150 = vadd.f32 %v148, %v149
    %v151 = vrot.slane %v105, 4
    %v152 = vadd.f32 %v105, %v151
    %v153 = vrot.slane %v152, 2
    %v154 = vadd.f32 %v152, %v153
    %v155 = vrot.slane %v154, 1
    %v156 = vadd.f32 %v154, %v155
    %v157 = vrot.slane %v106, 4
    %v158 = vadd.f32 %v106, %v157
    %v159 = vrot.slane %v158, 2
    %v160 = vadd.f32 %v158, %v159
    %v161 = vrot.slane %v160, 1
    %v162 = vadd.f32 %v160, %v161
    %v163 = vrot.slane %v107, 4
    %v164 = vadd.f32 %v107, %v163
    %v165 = vrot.slane %v164, 2
    %v166 = vadd.f32 %v164, %v165
    %v167 = vrot.slane %v166, 1
    %v168 = vadd.f32 %v166, %v167
    %v169 = vrot.slane %v108, 4
    %v170 = vadd.f32 %v108, %v169
    %v171 = vrot.slane %v170, 2
    %v172 = vadd.f32 %v170, %v171
    %v173 = vrot.slane %v172, 1
    %v174 = vadd.f32 %v172, %v173
    %v175 = vrot.slane %v109, 4
    %v176 = vadd.f32 %v109, %v175
    %v177 = vrot.slane %v176, 2
    %v178 = vadd.f32 %v176, %v177
    %v179 = vrot.slane %v178, 1
    %v180 = vadd.f32 %v178, %v179
    %v181 = vrot.slane %v110, 4
    %v182 = vadd.f32 %v110, %v181
    %v183 = vrot.slane %v182, 2
    %v184 = vadd.f32 %v182, %v183
    %v185 = vrot.slane %v184, 1
    %v186 = vadd.f32 %v184, %v185
    %v187 = vrot.slane %v111, 4
    %v188 = vadd.f32 %v111, %v187
    %v189 = vrot.slane %v188, 2
    %v190 = vadd.f32 %v188, %v189
    %v191 = vrot.slane %v190, 1
    %v192 = vadd.f32 %v190, %v191
    %v193 = vrot.slane %v112, 4
    %v194 = vadd.f32 %v112, %v193
    %v195 = vrot.slane %v194, 2
    %v196 = vadd.f32 %v194, %v195
    %v197 = vrot.slane %v196, 1
    %v198 = vadd.f32 %v196, %v197
    %v199 = vrot.slane %v113, 4
    %v200 = vadd.f32 %v113, %v199
    %v201 = vrot.slane %v200, 2
    %v202 = vadd.f32 %v200, %v201
    %v203 = vrot.slane %v202, 1
    %v204 = vadd.f32 %v202, %v203
    %v205 = vrot.slane %v114, 4
    %v206 = vadd.f32 %v114, %v205
    %v207 = vrot.slane %v206, 2
    %v208 = vadd.f32 %v206, %v207
    %v209 = vrot.slane %v208, 1
    %v210 = vadd.f32 %v208, %v209
    %v211 = vpack.c.bf16 %v120, %v120
    %v212 = vpack.c.bf16 %v126, %v126
    %v213 = vpack.c.bf16 %v132, %v132
    %v214 = vpack.c.bf16 %v138, %v138
    %v215 = vpack.c.bf16 %v144, %v144
    %v216 = vpack.c.bf16 %v150, %v150
    %v217 = vpack.c.bf16 %v156, %v156
    %v218 = vpack.c.bf16 %v162, %v162
    %v219 = vpack.c.bf16 %v168, %v168
    %v220 = vpack.c.bf16 %v174, %v174
    %v221 = vpack.c.bf16 %v180, %v180
    %v222 = vpack.c.bf16 %v186, %v186
    %v223 = vpack.c.bf16 %v192, %v192
    %v224 = vpack.c.bf16 %v198, %v198
    %v225 = vpack.c.bf16 %v204, %v204
    %v226 = vpack.c.bf16 %v210, %v210
    %v227 = vld [vmem:[#allocation5] sm:$0xf]
    %v228 = vld [vmem:[#allocation5 + $0x4] sm:$0xf]
    %v229 = vld [vmem:[#allocation5 + $0x8] sm:$0xf]
    %v230 = vld [vmem:[#allocation5 + $0xc] sm:$0xf]
    %v231 = vld [vmem:[#allocation5 + $0x10] sm:$0xf]
    %v232 = vld [vmem:[#allocation5 + $0x14] sm:$0xf]
    %v233 = vld [vmem:[#allocation5 + $0x18] sm:$0xf]
    %v234 = vld [vmem:[#allocation5 + $0x1c] sm:$0xf]
    %v235 = vld [vmem:[#allocation5 + $0x20] sm:$0xf]
    %v236 = vld [vmem:[#allocation5 + $0x24] sm:$0xf]
    %v237 = vld [vmem:[#allocation5 + $0x28] sm:$0xf]
    %v238 = vld [vmem:[#allocation5 + $0x2c] sm:$0xf]
    %v239 = vld [vmem:[#allocation5 + $0x30] sm:$0xf]
    %v240 = vld [vmem:[#allocation5 + $0x34] sm:$0xf]
    %v241 = vld [vmem:[#allocation5 + $0x38] sm:$0xf]
    %v242 = vld [vmem:[#allocation5 + $0x3c] sm:$0xf]
    %v243 = vld [vmem:[%s2] sm:$0x1]
    %v245 = vlaneseq
    %v246 = vshrl.u32 %v245, 7
    %v247 = vsub.s32 0, %v246
    %v248 = vrot.slane %v243, %v247
    %v266 = vunpack.c.l.b16 %v211
    %v267 = vunpack.c.l.b16 %v212
    %v268 = vunpack.c.l.b16 %v213
    %v269 = vunpack.c.l.b16 %v214
    %v270 = vunpack.c.l.b16 %v215
    %v271 = vunpack.c.l.b16 %v216
    %v272 = vunpack.c.l.b16 %v217
    %v273 = vunpack.c.l.b16 %v218
    %v274 = vunpack.c.l.b16 %v219
    %v275 = vunpack.c.l.b16 %v220
    %v276 = vunpack.c.l.b16 %v221
    %v277 = vunpack.c.l.b16 %v222
    %v278 = vunpack.c.l.b16 %v223
    %v279 = vunpack.c.l.b16 %v224
    %v280 = vunpack.c.l.b16 %v225
    %v281 = vunpack.c.l.b16 %v226
    %vm282 = vcmask 1041409
    %v283 = vsel %vm282, %v267, %v266
    %vm284 = vcmask 1042434
    %v285 = vsel %vm284, %v268, %v283
    %vm286 = vcmask 1043459
    %v287 = vsel %vm286, %v269, %v285
    %vm288 = vcmask 1044484
    %v289 = vsel %vm288, %v270, %v287
    %vm290 = vcmask 1045509
    %v291 = vsel %vm290, %v271, %v289
    %vm292 = vcmask 1046534
    %v293 = vsel %vm292, %v272, %v291
    %vm294 = vcmask 1047559
    %v295 = vsel %vm294, %v273, %v293
    %v296 = vsel %vm282, %v275, %v274
    %v297 = vsel %vm284, %v276, %v296
    %v298 = vsel %vm286, %v277, %v297
    %v299 = vsel %vm288, %v278, %v298
    %v300 = vsel %vm290, %v279, %v299
    %v301 = vsel %vm292, %v280, %v300
    %v302 = vsel %vm294, %v281, %v301
    %v303 = vpack.c.b16 %v302, %v295
    %v321 = vunpack.c.l.b16 %v227
    %v322 = vunpack.c.l.b16 %v228
    %v323 = vunpack.c.l.b16 %v229
    %v324 = vunpack.c.l.b16 %v230
    %v325 = vunpack.c.l.b16 %v231
    %v326 = vunpack.c.l.b16 %v232
    %v327 = vunpack.c.l.b16 %v233
    %v328 = vunpack.c.l.b16 %v234
    %v329 = vunpack.c.l.b16 %v235
    %v330 = vunpack.c.l.b16 %v236
    %v331 = vunpack.c.l.b16 %v237
    %v332 = vunpack.c.l.b16 %v238
    %v333 = vunpack.c.l.b16 %v239
    %v334 = vunpack.c.l.b16 %v240
    %v335 = vunpack.c.l.b16 %v241
    %v336 = vunpack.c.l.b16 %v242
    %v337 = vpack.c.b16 %v322, %v321
    %v338 = vpack.c.b16 %v324, %v323
    %v339 = vpack.c.b16 %v326, %v325
    %v340 = vpack.c.b16 %v328, %v327
    %v341 = vpack.c.b16 %v330, %v329
    %v342 = vpack.c.b16 %v332, %v331
    %v343 = vpack.c.b16 %v334, %v333
    %v344 = vpack.c.b16 %v336, %v335
    %353 = vmatprep.subr.bf16.mxu0 0
    %354 = vmatpush1.bf16.msra.mxu0 %v337
    %355 = vmatprep.subr.bf16.mxu0 0
    %356 = vmatpush1.bf16.msra.mxu0 %v338
    %357 = vmatprep.subr.bf16.mxu0 0
    %358 = vmatpush1.bf16.msra.mxu0 %v339
    %359 = vmatprep.subr.bf16.mxu0 0
    %360 = vmatpush1.bf16.msra.mxu0 %v340
    %361 = vmatprep.subr.bf16.mxu0 0
    %362 = vmatpush1.bf16.msra.mxu0 %v341
    %363 = vmatprep.subr.bf16.mxu0 0
    %364 = vmatpush1.bf16.msra.mxu0 %v342
    %365 = vmatprep.subr.bf16.mxu0 0
    %366 = vmatpush1.bf16.msra.mxu0 %v343
    %367 = vmatprep.subr.bf16.mxu0 0
    %368 = vmatpush1.bf16.msra.mxu0 %v344
    %369 = vmatprep.subr.bf16.mxu0 0
    %370 = vmatpush1.bf16.msra.mxu0 0
    %371 = vmatprep.subr.bf16.mxu0 0
    %372 = vmatpush1.bf16.msra.mxu0 0
    %373 = vmatprep.subr.bf16.mxu0 0
    %374 = vmatpush1.bf16.msra.mxu0 0
    %375 = vmatprep.subr.bf16.mxu0 0
    %376 = vmatpush1.bf16.msra.mxu0 0
    %377 = vmatprep.subr.bf16.mxu0 0
    %378 = vmatpush1.bf16.msra.mxu0 0
    %379 = vmatprep.subr.bf16.mxu0 0
    %380 = vmatpush1.bf16.msra.mxu0 0
    %381 = vmatprep.subr.bf16.mxu0 0
    %382 = vmatpush1.bf16.msra.mxu0 0
    %383 = vmatprep.subr.bf16.mxu0 0
    %384 = vmatpush1.bf16.msra.mxu0 0
    %385 = vmatprep.mubr.bf16.mxu0 0
    %386 = vmatmul.mubr.bf16.gmra.mrb[0].mxu0 %v303
    %v387 = vpop.f32.mrb[0].mxu0
    %v388 = vadd.f32 %v248, %v387
    %v389 = vpop.f32.mrb[0].mxu0
    %v390 = vpop.f32.mrb[0].mxu0
    %v391 = vadd.f32 %v248, %v390
    %v392 = vpop.f32.mrb[0].mxu0
    %393 = vdwg.mxu0
    %v394 = vpack.c.bf16 %v391, %v388
    %v395 = vld [vmem:[#allocation7] sm:$0xff]
    %v396 = vld [vmem:[#allocation7 + $0x8] sm:$0xff]
    %v397 = vld [vmem:[#allocation7 + $0x10] sm:$0xff]
    %v398 = vld [vmem:[#allocation7 + $0x18] sm:$0xff]
    %v399 = vld [vmem:[#allocation7 + $0x20] sm:$0xff]
    %v400 = vld [vmem:[#allocation7 + $0x28] sm:$0xff]
    %v401 = vld [vmem:[#allocation7 + $0x30] sm:$0xff]
    %v402 = vld [vmem:[#allocation7 + $0x38] sm:$0xff]
    %v403 = vld [vmem:[#allocation7 + $0x40] sm:$0xff]
    %v404 = vld [vmem:[#allocation7 + $0x48] sm:$0xff]
    %v405 = vld [vmem:[#allocation7 + $0x50] sm:$0xff]
    %v406 = vld [vmem:[#allocation7 + $0x58] sm:$0xff]
    %v407 = vld [vmem:[#allocation7 + $0x60] sm:$0xff]
    %v408 = vld [vmem:[#allocation7 + $0x68] sm:$0xff]
    %v409 = vld [vmem:[#allocation7 + $0x70] sm:$0xff]
    %v410 = vld [vmem:[#allocation7 + $0x78] sm:$0xff]
    %v411 = vld [vmem:[#allocation7 + $0x80] sm:$0xff]
    %v412 = vld [vmem:[#allocation7 + $0x88] sm:$0xff]
    %v413 = vld [vmem:[#allocation7 + $0x90] sm:$0xff]
    %v414 = vld [vmem:[#allocation7 + $0x98] sm:$0xff]
    %v415 = vld [vmem:[#allocation7 + $0xa0] sm:$0xff]
    %v416 = vld [vmem:[#allocation7 + $0xa8] sm:$0xff]
    %v417 = vld [vmem:[#allocation7 + $0xb0] sm:$0xff]
    %v418 = vld [vmem:[#allocation7 + $0xb8] sm:$0xff]
    %v419 = vld [vmem:[#allocation7 + $0xc0] sm:$0xff]
    %v420 = vld [vmem:[#allocation7 + $0xc8] sm:$0xff]
    %v421 = vld [vmem:[#allocation7 + $0xd0] sm:$0xff]
    %v422 = vld [vmem:[#allocation7 + $0xd8] sm:$0xff]
    %v423 = vld [vmem:[#allocation7 + $0xe0] sm:$0xff]
    %v424 = vld [vmem:[#allocation7 + $0xe8] sm:$0xff]
    %v425 = vld [vmem:[#allocation7 + $0xf0] sm:$0xff]
    %v426 = vld [vmem:[#allocation7 + $0xf8] sm:$0xff]
    %v427 = vld [vmem:[%s4] sm:$0xf]
    %v429 = vlaneseq
    %v430 = vshrl.u32 %v429, 7
    %v431 = vsub.s32 0, %v430
    %v432 = vrot.slane %v427, %v431
    %v433 = vlaneseq
    %v434 = vshrl.u32 %v433, 7
    %v435 = vsub.s32 1, %v434
    %v436 = vrot.slane %v427, %v435
    %v437 = vlaneseq
    %v438 = vshrl.u32 %v437, 7
    %v439 = vsub.s32 2, %v438
    %v440 = vrot.slane %v427, %v439
    %v441 = vlaneseq
    %v442 = vshrl.u32 %v441, 7
    %v443 = vsub.s32 3, %v442
    %v444 = vrot.slane %v427, %v443
    %v481 = vunpack.c.l.b16 %v395
    %v482 = vunpack.c.h.b16 %v395
    %v483 = vunpack.c.l.b16 %v396
    %v484 = vunpack.c.h.b16 %v396
    %v485 = vunpack.c.l.b16 %v397
    %v486 = vunpack.c.h.b16 %v397
    %v487 = vunpack.c.l.b16 %v398
    %v488 = vunpack.c.h.b16 %v398
    %v489 = vunpack.c.l.b16 %v399
    %v490 = vunpack.c.h.b16 %v399
    %v491 = vunpack.c.l.b16 %v400
    %v492 = vunpack.c.h.b16 %v400
    %v493 = vunpack.c.l.b16 %v401
    %v494 = vunpack.c.h.b16 %v401
    %v495 = vunpack.c.l.b16 %v402
    %v496 = vunpack.c.h.b16 %v402
    %v497 = vunpack.c.l.b16 %v403
    %v498 = vunpack.c.h.b16 %v403
    %v499 = vunpack.c.l.b16 %v404
    %v500 = vunpack.c.h.b16 %v404
    %v501 = vunpack.c.l.b16 %v405
    %v502 = vunpack.c.h.b16 %v405
    %v503 = vunpack.c.l.b16 %v406
    %v504 = vunpack.c.h.b16 %v406
    %v505 = vunpack.c.l.b16 %v407
    %v506 = vunpack.c.h.b16 %v407
    %v507 = vunpack.c.l.b16 %v408
    %v508 = vunpack.c.h.b16 %v408
    %v509 = vunpack.c.l.b16 %v409
    %v510 = vunpack.c.h.b16 %v409
    %v511 = vunpack.c.l.b16 %v410
    %v512 = vunpack.c.h.b16 %v410
    %v513 = vunpack.c.l.b16 %v411
    %v514 = vunpack.c.h.b16 %v411
    %v515 = vunpack.c.l.b16 %v412
    %v516 = vunpack.c.h.b16 %v412
    %v517 = vunpack.c.l.b16 %v413
    %v518 = vunpack.c.h.b16 %v413
    %v519 = vunpack.c.l.b16 %v414
    %v520 = vunpack.c.h.b16 %v414
    %v521 = vunpack.c.l.b16 %v415
    %v522 = vunpack.c.h.b16 %v415
    %v523 = vunpack.c.l.b16 %v416
    %v524 = vunpack.c.h.b16 %v416
    %v525 = vunpack.c.l.b16 %v417
    %v526 = vunpack.c.h.b16 %v417
    %v527 = vunpack.c.l.b16 %v418
    %v528 = vunpack.c.h.b16 %v418
    %v529 = vunpack.c.l.b16 %v419
    %v530 = vunpack.c.h.b16 %v419
    %v531 = vunpack.c.l.b16 %v420
    %v532 = vunpack.c.h.b16 %v420
    %v533 = vunpack.c.l.b16 %v421
    %v534 = vunpack.c.h.b16 %v421
    %v535 = vunpack.c.l.b16 %v422
    %v536 = vunpack.c.h.b16 %v422
    %v537 = vunpack.c.l.b16 %v423
    %v538 = vunpack.c.h.b16 %v423
    %v539 = vunpack.c.l.b16 %v424
    %v540 = vunpack.c.h.b16 %v424
    %v541 = vunpack.c.l.b16 %v425
    %v542 = vunpack.c.h.b16 %v425
    %v543 = vunpack.c.l.b16 %v426
    %v544 = vunpack.c.h.b16 %v426
    %v545 = vpack.c.b16 %v485, %v481
    %v546 = vpack.c.b16 %v486, %v482
    %v547 = vpack.c.b16 %v487, %v483
    %v548 = vpack.c.b16 %v488, %v484
    %v549 = vpack.c.b16 %v493, %v489
    %v550 = vpack.c.b16 %v494, %v490
    %v551 = vpack.c.b16 %v495, %v491
    %v552 = vpack.c.b16 %v496, %v492
    %v553 = vpack.c.b16 %v501, %v497
    %v554 = vpack.c.b16 %v502, %v498
    %v555 = vpack.c.b16 %v503, %v499
    %v556 = vpack.c.b16 %v504, %v500
    %v557 = vpack.c.b16 %v509, %v505
    %v558 = vpack.c.b16 %v510, %v506
    %v559 = vpack.c.b16 %v511, %v507
    %v560 = vpack.c.b16 %v512, %v508
    %v561 = vpack.c.b16 %v517, %v513
    %v562 = vpack.c.b16 %v518, %v514
    %v563 = vpack.c.b16 %v519, %v515
    %v564 = vpack.c.b16 %v520, %v516
    %v565 = vpack.c.b16 %v525, %v521
    %v566 = vpack.c.b16 %v526, %v522
    %v567 = vpack.c.b16 %v527, %v523
    %v568 = vpack.c.b16 %v528, %v524
    %v569 = vpack.c.b16 %v533, %v529
    %v570 = vpack.c.b16 %v534, %v530
    %v571 = vpack.c.b16 %v535, %v531
    %v572 = vpack.c.b16 %v536, %v532
    %v573 = vpack.c.b16 %v541, %v537
    %v574 = vpack.c.b16 %v542, %v538
    %v575 = vpack.c.b16 %v543, %v539
    %v576 = vpack.c.b16 %v544, %v540
    %609 = vmatprep.subr.bf16.mxu0 %v546
    %610 = vmatpush1.bf16.msra.mxu0 %v545
    %611 = vmatprep.subr.bf16.mxu0 %v550
    %612 = vmatpush1.bf16.msra.mxu0 %v549
    %613 = vmatprep.subr.bf16.mxu0 %v554
    %614 = vmatpush1.bf16.msra.mxu0 %v553
    %615 = vmatprep.subr.bf16.mxu0 %v558
    %616 = vmatpush1.bf16.msra.mxu0 %v557
    %617 = vmatprep.subr.bf16.mxu0 %v562
    %618 = vmatpush1.bf16.msra.mxu0 %v561
    %619 = vmatprep.subr.bf16.mxu0 %v566
    %620 = vmatpush1.bf16.msra.mxu0 %v565
    %621 = vmatprep.subr.bf16.mxu0 %v570
    %622 = vmatpush1.bf16.msra.mxu0 %v569
    %623 = vmatprep.subr.bf16.mxu0 %v574
    %624 = vmatpush1.bf16.msra.mxu0 %v573
    %625 = vmatprep.subr.bf16.mxu0 0
    %626 = vmatpush1.bf16.msra.mxu0 0
    %627 = vmatprep.subr.bf16.mxu0 0
    %628 = vmatpush1.bf16.msra.mxu0 0
    %629 = vmatprep.subr.bf16.mxu0 0
    %630 = vmatpush1.bf16.msra.mxu0 0
    %631 = vmatprep.subr.bf16.mxu0 0
    %632 = vmatpush1.bf16.msra.mxu0 0
    %633 = vmatprep.subr.bf16.mxu0 0
    %634 = vmatpush1.bf16.msra.mxu0 0
    %635 = vmatprep.subr.bf16.mxu0 0
    %636 = vmatpush1.bf16.msra.mxu0 0
    %637 = vmatprep.subr.bf16.mxu0 0
    %638 = vmatpush1.bf16.msra.mxu0 0
    %639 = vmatprep.subr.bf16.mxu0 0
    %640 = vmatpush1.bf16.msra.mxu0 0
    %641 = vmatprep.mubr.bf16.mxu0 0
    %642 = vmatmul.mubr.bf16.gmra.mrb[0].mxu0 %v394
    %v643 = vpop.f32.mrb[0].mxu0
    %v644 = vadd.f32 %v432, %v643
    %v645 = vpop.f32.mrb[0].mxu0
    %v646 = vadd.f32 %v436, %v645
    %v647 = vpop.f32.mrb[0].mxu0
    %v648 = vadd.f32 %v432, %v647
    %v649 = vpop.f32.mrb[0].mxu0
    %v650 = vadd.f32 %v436, %v649
    %651 = vdwg.mxu0
    %652 = vmatprep.subr.bf16.mxu0 %v548
    %653 = vmatpush1.bf16.msra.mxu0 %v547
    %654 = vmatprep.subr.bf16.mxu0 %v552
    %655 = vmatpush1.bf16.msra.mxu0 %v551
    %656 = vmatprep.subr.bf16.mxu0 %v556
    %657 = vmatpush1.bf16.msra.mxu0 %v555
    %658 = vmatprep.subr.bf16.mxu0 %v560
    %659 = vmatpush1.bf16.msra.mxu0 %v559
    %660 = vmatprep.subr.bf16.mxu0 %v564
    %661 = vmatpush1.bf16.msra.mxu0 %v563
    %662 = vmatprep.subr.bf16.mxu0 %v568
    %663 = vmatpush1.bf16.msra.mxu0 %v567
    %664 = vmatprep.subr.bf16.mxu0 %v572
    %665 = vmatpush1.bf16.msra.mxu0 %v571
    %666 = vmatprep.subr.bf16.mxu0 %v576
    %667 = vmatpush1.bf16.msra.mxu0 %v575
    %668 = vmatprep.subr.bf16.mxu0 0
    %669 = vmatpush1.bf16.msra.mxu0 0
    %670 = vmatprep.subr.bf16.mxu0 0
    %671 = vmatpush1.bf16.msra.mxu0 0
    %672 = vmatprep.subr.bf16.mxu0 0
    %673 = vmatpush1.bf16.msra.mxu0 0
    %674 = vmatprep.subr.bf16.mxu0 0
    %675 = vmatpush1.bf16.msra.mxu0 0
    %676 = vmatprep.subr.bf16.mxu0 0
    %677 = vmatpush1.bf16.msra.mxu0 0
    %678 = vmatprep.subr.bf16.mxu0 0
    %679 = vmatpush1.bf16.msra.mxu0 0
    %680 = vmatprep.subr.bf16.mxu0 0
    %681 = vmatpush1.bf16.msra.mxu0 0
    %682 = vmatprep.subr.bf16.mxu0 0
    %683 = vmatpush1.bf16.msra.mxu0 0
    %684 = vmatprep.mubr.bf16.mxu0 0
    %685 = vmatmul.mubr.bf16.gmra.mrb[0].mxu0 %v394
    %v686 = vpop.f32.mrb[0].mxu0
    %v687 = vadd.f32 %v440, %v686
    %v688 = vpop.f32.mrb[0].mxu0
    %v689 = vadd.f32 %v444, %v688
    %v690 = vpop.f32.mrb[0].mxu0
    %v691 = vadd.f32 %v440, %v690
    %v692 = vpop.f32.mrb[0].mxu0
    %v693 = vadd.f32 %v444, %v692
    %694 = vdwg.mxu0
    %v695 = vpack.c.bf16 %v648, %v644
    %v696 = vpack.c.bf16 %v650, %v646
    %v697 = vpack.c.bf16 %v691, %v687
    %v698 = vpack.c.bf16 %v693, %v689
    %v699 = vld [vmem:[#allocation8] sm:$0xff]
    %v700 = vld [vmem:[#allocation8 + $0x8] sm:$0xff]
    %v701 = vld [vmem:[#allocation8 + $0x10] sm:$0xff]
    %v702 = vld [vmem:[#allocation8 + $0x18] sm:$0xff]
    %v703 = vld [vmem:[#allocation8 + $0x20] sm:$0xff]
    %v704 = vld [vmem:[#allocation8 + $0x28] sm:$0xff]
    %v705 = vld [vmem:[#allocation8 + $0x30] sm:$0xff]
    %v706 = vld [vmem:[#allocation8 + $0x38] sm:$0xff]
    %v707 = vld [vmem:[#allocation8 + $0x40] sm:$0xff]
    %v708 = vld [vmem:[#allocation8 + $0x48] sm:$0xff]
    %v709 = vld [vmem:[#allocation8 + $0x50] sm:$0xff]
    %v710 = vld [vmem:[#allocation8 + $0x58] sm:$0xff]
    %v711 = vld [vmem:[#allocation8 + $0x60] sm:$0xff]
    %v712 = vld [vmem:[#allocation8 + $0x68] sm:$0xff]
    %v713 = vld [vmem:[#allocation8 + $0x70] sm:$0xff]
    %v714 = vld [vmem:[#allocation8 + $0x78] sm:$0xff]
    %v715 = vld [vmem:[#allocation8 + $0x80] sm:$0xff]
    %v716 = vld [vmem:[#allocation8 + $0x88] sm:$0xff]
    %v717 = vld [vmem:[#allocation8 + $0x90] sm:$0xff]
    %v718 = vld [vmem:[#allocation8 + $0x98] sm:$0xff]
    %v719 = vld [vmem:[#allocation8 + $0xa0] sm:$0xff]
    %v720 = vld [vmem:[#allocation8 + $0xa8] sm:$0xff]
    %v721 = vld [vmem:[#allocation8 + $0xb0] sm:$0xff]
    %v722 = vld [vmem:[#allocation8 + $0xb8] sm:$0xff]
    %v723 = vld [vmem:[#allocation8 + $0xc0] sm:$0xff]
    %v724 = vld [vmem:[#allocation8 + $0xc8] sm:$0xff]
    %v725 = vld [vmem:[#allocation8 + $0xd0] sm:$0xff]
    %v726 = vld [vmem:[#allocation8 + $0xd8] sm:$0xff]
    %v727 = vld [vmem:[#allocation8 + $0xe0] sm:$0xff]
    %v728 = vld [vmem:[#allocation8 + $0xe8] sm:$0xff]
    %v729 = vld [vmem:[#allocation8 + $0xf0] sm:$0xff]
    %v730 = vld [vmem:[#allocation8 + $0xf8] sm:$0xff]
    %v731 = vld [vmem:[#allocation8 + $0x100] sm:$0xff]
    %v732 = vld [vmem:[#allocation8 + $0x108] sm:$0xff]
    %v733 = vld [vmem:[#allocation8 + $0x110] sm:$0xff]
    %v734 = vld [vmem:[#allocation8 + $0x118] sm:$0xff]
    %v735 = vld [vmem:[#allocation8 + $0x120] sm:$0xff]
    %v736 = vld [vmem:[#allocation8 + $0x128] sm:$0xff]
    %v737 = vld [vmem:[#allocation8 + $0x130] sm:$0xff]
    %v738 = vld [vmem:[#allocation8 + $0x138] sm:$0xff]
    %v739 = vld [vmem:[#allocation8 + $0x140] sm:$0xff]
    %v740 = vld [vmem:[#allocation8 + $0x148] sm:$0xff]
    %v741 = vld [vmem:[#allocation8 + $0x150] sm:$0xff]
    %v742 = vld [vmem:[#allocation8 + $0x158] sm:$0xff]
    %v743 = vld [vmem:[#allocation8 + $0x160] sm:$0xff]
    %v744 = vld [vmem:[#allocation8 + $0x168] sm:$0xff]
    %v745 = vld [vmem:[#allocation8 + $0x170] sm:$0xff]
    %v746 = vld [vmem:[#allocation8 + $0x178] sm:$0xff]
    %v747 = vld [vmem:[#allocation8 + $0x180] sm:$0xff]
    %v748 = vld [vmem:[#allocation8 + $0x188] sm:$0xff]
    %v749 = vld [vmem:[#allocation8 + $0x190] sm:$0xff]
    %v750 = vld [vmem:[#allocation8 + $0x198] sm:$0xff]
    %v751 = vld [vmem:[#allocation8 + $0x1a0] sm:$0xff]
    %v752 = vld [vmem:[#allocation8 + $0x1a8] sm:$0xff]
    %v753 = vld [vmem:[#allocation8 + $0x1b0] sm:$0xff]
    %v754 = vld [vmem:[#allocation8 + $0x1b8] sm:$0xff]
    %v755 = vld [vmem:[#allocation8 + $0x1c0] sm:$0xff]
    %v756 = vld [vmem:[#allocation8 + $0x1c8] sm:$0xff]
    %v757 = vld [vmem:[#allocation8 + $0x1d0] sm:$0xff]
    %v758 = vld [vmem:[#allocation8 + $0x1d8] sm:$0xff]
    %v759 = vld [vmem:[#allocation8 + $0x1e0] sm:$0xff]
    %v760 = vld [vmem:[#allocation8 + $0x1e8] sm:$0xff]
    %v761 = vld [vmem:[#allocation8 + $0x1f0] sm:$0xff]
    %v762 = vld [vmem:[#allocation8 + $0x1f8] sm:$0xff]
    %v763 = vld [vmem:[%s6] sm:$0x3]
    %v765 = vlaneseq
    %v766 = vshrl.u32 %v765, 7
    %v767 = vsub.s32 0, %v766
    %v768 = vrot.slane %v763, %v767
    %v769 = vlaneseq
    %v770 = vshrl.u32 %v769, 7
    %v771 = vsub.s32 1, %v770
    %v772 = vrot.slane %v763, %v771
    %v839 = vunpack.c.l.b16 %v699
    %v840 = vunpack.c.h.b16 %v699
    %v841 = vunpack.c.l.b16 %v700
    %v842 = vunpack.c.h.b16 %v700
    %v843 = vunpack.c.l.b16 %v701
    %v844 = vunpack.c.h.b16 %v701
    %v845 = vunpack.c.l.b16 %v702
    %v846 = vunpack.c.h.b16 %v702
    %v847 = vunpack.c.l.b16 %v703
    %v848 = vunpack.c.h.b16 %v703
    %v849 = vunpack.c.l.b16 %v704
    %v850 = vunpack.c.h.b16 %v704
    %v851 = vunpack.c.l.b16 %v705
    %v852 = vunpack.c.h.b16 %v705
    %v853 = vunpack.c.l.b16 %v706
    %v854 = vunpack.c.h.b16 %v706
    %v855 = vunpack.c.l.b16 %v707
    %v856 = vunpack.c.h.b16 %v707
    %v857 = vunpack.c.l.b16 %v708
    %v858 = vunpack.c.h.b16 %v708
    %v859 = vunpack.c.l.b16 %v709
    %v860 = vunpack.c.h.b16 %v709
    %v861 = vunpack.c.l.b16 %v710
    %v862 = vunpack.c.h.b16 %v710
    %v863 = vunpack.c.l.b16 %v711
    %v864 = vunpack.c.h.b16 %v711
    %v865 = vunpack.c.l.b16 %v712
    %v866 = vunpack.c.h.b16 %v712
    %v867 = vunpack.c.l.b16 %v713
    %v868 = vunpack.c.h.b16 %v713
    %v869 = vunpack.c.l.b16 %v714
    %v870 = vunpack.c.h.b16 %v714
    %v871 = vunpack.c.l.b16 %v715
    %v872 = vunpack.c.h.b16 %v715
    %v873 = vunpack.c.l.b16 %v716
    %v874 = vunpack.c.h.b16 %v716
    %v875 = vunpack.c.l.b16 %v717
    %v876 = vunpack.c.h.b16 %v717
    %v877 = vunpack.c.l.b16 %v718
    %v878 = vunpack.c.h.b16 %v718
    %v879 = vunpack.c.l.b16 %v719
    %v880 = vunpack.c.h.b16 %v719
    %v881 = vunpack.c.l.b16 %v720
    %v882 = vunpack.c.h.b16 %v720
    %v883 = vunpack.c.l.b16 %v721
    %v884 = vunpack.c.h.b16 %v721
    %v885 = vunpack.c.l.b16 %v722
    %v886 = vunpack.c.h.b16 %v722
    %v887 = vunpack.c.l.b16 %v723
    %v888 = vunpack.c.h.b16 %v723
    %v889 = vunpack.c.l.b16 %v724
    %v890 = vunpack.c.h.b16 %v724
    %v891 = vunpack.c.l.b16 %v725
    %v892 = vunpack.c.h.b16 %v725
    %v893 = vunpack.c.l.b16 %v726
    %v894 = vunpack.c.h.b16 %v726
    %v895 = vunpack.c.l.b16 %v727
    %v896 = vunpack.c.h.b16 %v727
    %v897 = vunpack.c.l.b16 %v728
    %v898 = vunpack.c.h.b16 %v728
    %v899 = vunpack.c.l.b16 %v729
    %v900 = vunpack.c.h.b16 %v729
    %v901 = vunpack.c.l.b16 %v730
    %v902 = vunpack.c.h.b16 %v730
    %v903 = vunpack.c.l.b16 %v731
    %v904 = vunpack.c.h.b16 %v731
    %v905 = vunpack.c.l.b16 %v732
    %v906 = vunpack.c.h.b16 %v732
    %v907 = vunpack.c.l.b16 %v733
    %v908 = vunpack.c.h.b16 %v733
    %v909 = vunpack.c.l.b16 %v734
    %v910 = vunpack.c.h.b16 %v734
    %v911 = vunpack.c.l.b16 %v735
    %v912 = vunpack.c.h.b16 %v735
    %v913 = vunpack.c.l.b16 %v736
    %v914 = vunpack.c.h.b16 %v736
    %v915 = vunpack.c.l.b16 %v737
    %v916 = vunpack.c.h.b16 %v737
    %v917 = vunpack.c.l.b16 %v738
    %v918 = vunpack.c.h.b16 %v738
    %v919 = vunpack.c.l.b16 %v739
    %v920 = vunpack.c.h.b16 %v739
    %v921 = vunpack.c.l.b16 %v740
    %v922 = vunpack.c.h.b16 %v740
    %v923 = vunpack.c.l.b16 %v741
    %v924 = vunpack.c.h.b16 %v741
    %v925 = vunpack.c.l.b16 %v742
    %v926 = vunpack.c.h.b16 %v742
    %v927 = vunpack.c.l.b16 %v743
    %v928 = vunpack.c.h.b16 %v743
    %v929 = vunpack.c.l.b16 %v744
    %v930 = vunpack.c.h.b16 %v744
    %v931 = vunpack.c.l.b16 %v745
    %v932 = vunpack.c.h.b16 %v745
    %v933 = vunpack.c.l.b16 %v746
    %v934 = vunpack.c.h.b16 %v746
    %v935 = vunpack.c.l.b16 %v747
    %v936 = vunpack.c.h.b16 %v747
    %v937 = vunpack.c.l.b16 %v748
    %v938 = vunpack.c.h.b16 %v748
    %v939 = vunpack.c.l.b16 %v749
    %v940 = vunpack.c.h.b16 %v749
    %v941 = vunpack.c.l.b16 %v750
    %v942 = vunpack.c.h.b16 %v750
    %v943 = vunpack.c.l.b16 %v751
    %v944 = vunpack.c.h.b16 %v751
    %v945 = vunpack.c.l.b16 %v752
    %v946 = vunpack.c.h.b16 %v752
    %v947 = vunpack.c.l.b16 %v753
    %v948 = vunpack.c.h.b16 %v753
    %v949 = vunpack.c.l.b16 %v754
    %v950 = vunpack.c.h.b16 %v754
    %v951 = vunpack.c.l.b16 %v755
    %v952 = vunpack.c.h.b16 %v755
    %v953 = vunpack.c.l.b16 %v756
    %v954 = vunpack.c.h.b16 %v756
    %v955 = vunpack.c.l.b16 %v757
    %v956 = vunpack.c.h.b16 %v757
    %v957 = vunpack.c.l.b16 %v758
    %v958 = vunpack.c.h.b16 %v758
    %v959 = vunpack.c.l.b16 %v759
    %v960 = vunpack.c.h.b16 %v759
    %v961 = vunpack.c.l.b16 %v760
    %v962 = vunpack.c.h.b16 %v760
    %v963 = vunpack.c.l.b16 %v761
    %v964 = vunpack.c.h.b16 %v761
    %v965 = vunpack.c.l.b16 %v762
    %v966 = vunpack.c.h.b16 %v762
    %v967 = vpack.c.b16 %v841, %v839
    %v968 = vpack.c.b16 %v842, %v840
    %v969 = vpack.c.b16 %v845, %v843
    %v970 = vpack.c.b16 %v846, %v844
    %v971 = vpack.c.b16 %v849, %v847
    %v972 = vpack.c.b16 %v850, %v848
    %v973 = vpack.c.b16 %v853, %v851
    %v974 = vpack.c.b16 %v854, %v852
    %v975 = vpack.c.b16 %v857, %v855
    %v976 = vpack.c.b16 %v858, %v856
    %v977 = vpack.c.b16 %v861, %v859
    %v978 = vpack.c.b16 %v862, %v860
    %v979 = vpack.c.b16 %v865, %v863
    %v980 = vpack.c.b16 %v866, %v864
    %v981 = vpack.c.b16 %v869, %v867
    %v982 = vpack.c.b16 %v870, %v868
    %v983 = vpack.c.b16 %v873, %v871
    %v984 = vpack.c.b16 %v874, %v872
    %v985 = vpack.c.b16 %v877, %v875
    %v986 = vpack.c.b16 %v878, %v876
    %v987 = vpack.c.b16 %v881, %v879
    %v988 = vpack.c.b16 %v882, %v880
    %v989 = vpack.c.b16 %v885, %v883
    %v990 = vpack.c.b16 %v886, %v884
    %v991 = vpack.c.b16 %v889, %v887
    %v992 = vpack.c.b16 %v890, %v888
    %v993 = vpack.c.b16 %v893, %v891
    %v994 = vpack.c.b16 %v894, %v892
    %v995 = vpack.c.b16 %v897, %v895
    %v996 = vpack.c.b16 %v898, %v896
    %v997 = vpack.c.b16 %v901, %v899
    %v998 = vpack.c.b16 %v902, %v900
    %v999 = vpack.c.b16 %v905, %v903
    %v1000 = vpack.c.b16 %v906, %v904
    %v1001 = vpack.c.b16 %v909, %v907
    %v1002 = vpack.c.b16 %v910, %v908
    %v1003 = vpack.c.b16 %v913, %v911
    %v1004 = vpack.c.b16 %v914, %v912
    %v1005 = vpack.c.b16 %v917, %v915
    %v1006 = vpack.c.b16 %v918, %v916
    %v1007 = vpack.c.b16 %v921, %v919
    %v1008 = vpack.c.b16 %v922, %v920
    %v1009 = vpack.c.b16 %v925, %v923
    %v1010 = vpack.c.b16 %v926, %v924
    %v1011 = vpack.c.b16 %v929, %v927
    %v1012 = vpack.c.b16 %v930, %v928
    %v1013 = vpack.c.b16 %v933, %v931
    %v1014 = vpack.c.b16 %v934, %v932
    %v1015 = vpack.c.b16 %v937, %v935
    %v1016 = vpack.c.b16 %v938, %v936
    %v1017 = vpack.c.b16 %v941, %v939
    %v1018 = vpack.c.b16 %v942, %v940
    %v1019 = vpack.c.b16 %v945, %v943
    %v1020 = vpack.c.b16 %v946, %v944
    %v1021 = vpack.c.b16 %v949, %v947
    %v1022 = vpack.c.b16 %v950, %v948
    %v1023 = vpack.c.b16 %v953, %v951
    %v1024 = vpack.c.b16 %v954, %v952
    %v1025 = vpack.c.b16 %v957, %v955
    %v1026 = vpack.c.b16 %v958, %v956
    %v1027 = vpack.c.b16 %v961, %v959
    %v1028 = vpack.c.b16 %v962, %v960
    %v1029 = vpack.c.b16 %v965, %v963
    %v1030 = vpack.c.b16 %v966, %v964
    %1095 = vmatprep.subr.bf16.mxu0 %v968
    %1096 = vmatpush1.bf16.msra.mxu0 %v967
    %1097 = vmatprep.subr.bf16.mxu0 %v970
    %1098 = vmatpush1.bf16.msra.mxu0 %v969
    %1099 = vmatprep.subr.bf16.mxu0 %v972
    %1100 = vmatpush1.bf16.msra.mxu0 %v971
    %1101 = vmatprep.subr.bf16.mxu0 %v974
    %1102 = vmatpush1.bf16.msra.mxu0 %v973
    %1103 = vmatprep.subr.bf16.mxu0 %v976
    %1104 = vmatpush1.bf16.msra.mxu0 %v975
    %1105 = vmatprep.subr.bf16.mxu0 %v978
    %1106 = vmatpush1.bf16.msra.mxu0 %v977
    %1107 = vmatprep.subr.bf16.mxu0 %v980
    %1108 = vmatpush1.bf16.msra.mxu0 %v979
    %1109 = vmatprep.subr.bf16.mxu0 %v982
    %1110 = vmatpush1.bf16.msra.mxu0 %v981
    %1111 = vmatprep.subr.bf16.mxu0 %v984
    %1112 = vmatpush1.bf16.msra.mxu0 %v983
    %1113 = vmatprep.subr.bf16.mxu0 %v986
    %1114 = vmatpush1.bf16.msra.mxu0 %v985
    %1115 = vmatprep.subr.bf16.mxu0 %v988
    %1116 = vmatpush1.bf16.msra.mxu0 %v987
    %1117 = vmatprep.subr.bf16.mxu0 %v990
    %1118 = vmatpush1.bf16.msra.mxu0 %v989
    %1119 = vmatprep.subr.bf16.mxu0 %v992
    %1120 = vmatpush1.bf16.msra.mxu0 %v991
    %1121 = vmatprep.subr.bf16.mxu0 %v994
    %1122 = vmatpush1.bf16.msra.mxu0 %v993
    %1123 = vmatprep.subr.bf16.mxu0 %v996
    %1124 = vmatpush1.bf16.msra.mxu0 %v995
    %1125 = vmatprep.subr.bf16.mxu0 %v998
    %1126 = vmatpush1.bf16.msra.mxu0 %v997
    %1127 = vmatprep.mubr.bf16.mxu0 %v696
    %1128 = vmatmul.mubr.bf16.gmra.mrb[0].mxu0 %v695
    %v1129 = vpop.f32.mrb[0].mxu0
    %v1130 = vadd.f32 %v768, %v1129
    %v1131 = vpop.f32.mrb[0].mxu0
    %v1132 = vadd.f32 %v772, %v1131
    %v1133 = vpop.f32.mrb[0].mxu0
    %v1134 = vadd.f32 %v768, %v1133
    %v1135 = vpop.f32.mrb[0].mxu0
    %v1136 = vadd.f32 %v772, %v1135
    %1137 = vdwg.mxu0
    %1138 = vmatprep.subr.bf16.mxu0 %v1000
    %1139 = vmatpush1.bf16.msra.mxu0 %v999
    %1140 = vmatprep.subr.bf16.mxu0 %v1002
    %1141 = vmatpush1.bf16.msra.mxu0 %v1001
    %1142 = vmatprep.subr.bf16.mxu0 %v1004
    %1143 = vmatpush1.bf16.msra.mxu0 %v1003
    %1144 = vmatprep.subr.bf16.mxu0 %v1006
    %1145 = vmatpush1.bf16.msra.mxu0 %v1005
    %1146 = vmatprep.subr.bf16.mxu0 %v1008
    %1147 = vmatpush1.bf16.msra.mxu0 %v1007
    %1148 = vmatprep.subr.bf16.mxu0 %v1010
    %1149 = vmatpush1.bf16.msra.mxu0 %v1009
    %1150 = vmatprep.subr.bf16.mxu0 %v1012
    %1151 = vmatpush1.bf16.msra.mxu0 %v1011
    %1152 = vmatprep.subr.bf16.mxu0 %v1014
    %1153 = vmatpush1.bf16.msra.mxu0 %v1013
    %1154 = vmatprep.subr.bf16.mxu0 %v1016
    %1155 = vmatpush1.bf16.msra.mxu0 %v1015
    %1156 = vmatprep.subr.bf16.mxu0 %v1018
    %1157 = vmatpush1.bf16.msra.mxu0 %v1017
    %1158 = vmatprep.subr.bf16.mxu0 %v1020
    %1159 = vmatpush1.bf16.msra.mxu0 %v1019
    %1160 = vmatprep.subr.bf16.mxu0 %v1022
    %1161 = vmatpush1.bf16.msra.mxu0 %v1021
    %1162 = vmatprep.subr.bf16.mxu0 %v1024
    %1163 = vmatpush1.bf16.msra.mxu0 %v1023
    %1164 = vmatprep.subr.bf16.mxu0 %v1026
    %1165 = vmatpush1.bf16.msra.mxu0 %v1025
    %1166 = vmatprep.subr.bf16.mxu0 %v1028
    %1167 = vmatpush1.bf16.msra.mxu0 %v1027
    %1168 = vmatprep.subr.bf16.mxu0 %v1030
    %1169 = vmatpush1.bf16.msra.mxu0 %v1029
    %1170 = vmatprep.mubr.bf16.mxu0 %v698
    %1171 = vmatmul.mubr.bf16.gmra.mrb[0].mxu0 %v697
    %v1172 = vpop.f32.mrb[0].mxu0
    %v1173 = vadd.f32 %v1130, %v1172
    %v1174 = vpop.f32.mrb[0].mxu0
    %v1175 = vadd.f32 %v1132, %v1174
    %v1176 = vpop.f32.mrb[0].mxu0
    %v1177 = vadd.f32 %v1134, %v1176
    %v1178 = vpop.f32.mrb[0].mxu0
    %v1179 = vadd.f32 %v1136, %v1178
    %1180 = vdwg.mxu0
    %1181 = vst [vmem:[#allocation10] sm:$0xff] %v1173
    %1182 = vst [vmem:[#allocation10 + $0x8] sm:$0xff] %v1175
    %1183 = vst [vmem:[#allocation10 + $0x10] sm:$0xff] %v1177
    %1184 = vst [vmem:[#allocation10 + $0x18] sm:$0xff] %v1179
    // Predicated region
    $region46: #{tpu_custom_call.1} parent=1 // pred_check
      _
    $region47: #{tpu_custom_call.1} parent=1 // pred_check_branch
      %1186 = sbr.rel (0) target = $region49
    $region48: #{tpu_custom_call.1} parent=1 // pred_region
      %s1188 = ssub.s32 512, 512
      %1189 = vsyncadd [#allocation4], %s1188
      %s1190 = sshll.u32 [#allocation10], 4
      %s1191 = int_to_ptr.vmem [resolvable:$true] %s1190
      %1196 = dma.vmem_to_hbm [thread:$0]  %s1191, 512, %s7, [#allocation4], 256, 256, 16
    $region49: #{tpu_custom_call.1} parent=1 // pred_fallthru
      _
    // Predicated region
    $region50: #{tpu_custom_call.1} parent=1 // pred_check
      _
    $region51: #{tpu_custom_call.1} parent=1 // pred_check_branch
      %1198 = sbr.rel (0) target = $region53
    $region52: #{tpu_custom_call.1} parent=1 // pred_region
      %1199 = dma.done [#allocation4], 512
    $region53: #{tpu_custom_call.1} parent=1 // pred_fallthru
      _
    %1200 = vsyncpa [#allocation3], 1
    %1201 = vsyncpa [#allocation6], 1
    %1202 = vsyncpa [#allocation9], 1
    %1203 = vsyncpa [#allocation4], 1

</llo_original>
